<compile_context>
chip_gen: v7x
topology: tpu7x:2x2x1
jax: 0.10.0
libtpu: 0.0.40
codegen_flags: <defaults>
</compile_context>

<pallas_src>
import functools
import math

import jax
import jax.numpy as jnp
from jax.experimental import pallas as pl
from jax.experimental.pallas import tpu as pltpu

KH = KW = 3  # 3x3 conv, stride=1, padding=1


def _sym_conv3x3_relu_kernel(x_ref, w_ref, b_ref, o_ref, pad_ref, *, H, W):
    """One grid step = one (batch element, branch) pair.

    x_ref:   (1, Cin, H*W)              NCHW input, spatial dims flattened onto lanes
    w_ref:   (Cout, 9*Cin)              taps laid out as (dh*3 + dw)*Cin + cin
    b_ref:   (Cout, 1)                  bias
    o_ref:   (1, 1, Cout, H*W)          NCHW-flat output slab (lane-dense)
    pad_ref: (Cin, (W+1) + H*W + (W+1)) VMEM scratch: flat image + zero halos
    """
    HW = H * W
    Cin = x_ref.shape[1]
    Cout = o_ref.shape[2]
    L = W + 1                      # halo width on each side of the flat image

    branch = pl.program_id(1)      # 0 -> model(x), 1 -> model(flip(x, H))
    x = x_ref[0]                   # (Cin, H*W)

    # Zero the halos every step (cheap, and correct regardless of which core /
    # grid step runs first on megacore), then write the interior.
    pad_ref[:, 0:L] = jnp.zeros((Cin, L), jnp.float32)
    pad_ref[:, L + HW:L + HW + L] = jnp.zeros((Cin, L), jnp.float32)

    @pl.when(branch == 0)
    def _():
        pad_ref[:, L:L + HW] = x

    @pl.when(branch != 0)
    def _():
        # flip along H == reverse the order of the W-wide row blocks.
        # Pure lane moves in VMEM; flip(x) never touches HBM.
        pad_ref[:, L:L + HW] = jnp.concatenate(
            [x[:, (H - 1 - i) * W:(H - i) * W] for i in range(H)], axis=1)

    # Column-validity masks: zero tap contributions that would wrap across
    # image rows (left neighbour of col 0 / right neighbour of col W-1).
    wcol = jax.lax.broadcasted_iota(jnp.int32, (1, W), 1)
    not_left = jnp.concatenate([(wcol > 0).astype(jnp.float32)] * H, axis=1)       # (1, HW)
    not_right = jnp.concatenate([(wcol < W - 1).astype(jnp.float32)] * H, axis=1)  # (1, HW)

    xp = pad_ref[...]              # (Cin, L + HW + L)

    # im2col: 9 lane-shifted views stacked along sublanes -> one K=9*Cin matmul.
    taps = []
    for dh in range(KH):
        for dw in range(KW):
            shift = (dh - 1) * W + (dw - 1)
            p = xp[:, L + shift:L + shift + HW]     # (Cin, HW), static lane slice
            if dw == 0:
                p = p * not_left
            elif dw == KW - 1:
                p = p * not_right
            taps.append(p)
    rhs = jnp.concatenate(taps, axis=0)             # (9*Cin, HW)

    # Single MXU call: (Cout, 9*Cin) @ (9*Cin, HW) -> (Cout, HW), f32 accumulate.
    acc = jnp.dot(w_ref[...], rhs, preferred_element_type=jnp.float32)
    acc = jnp.maximum(acc + b_ref[...], 0.0)        # bias + ReLU
    o_ref[...] = acc.reshape(1, 1, Cout, HW).astype(o_ref.dtype)


@jax.jit
def symmetric_out_model(x_nchw, w, b):
    """forward(x) = [model(x), model(flip(x, dim=2))], model = Conv3x3(pad=1)+ReLU."""
    N, Cin, H, W = x_nchw.shape
    Cout = w.shape[0]
    HW = H * W
    L = W + 1

    # Free layout plumbing only (contiguous reshapes; no transpose/pad/flip copies).
    x_flat = x_nchw.reshape(N, Cin, HW)
    w_taps = jnp.transpose(w, (0, 2, 3, 1)).reshape(Cout, KH * KW * Cin)
    b2 = b.reshape(Cout, 1)

    kernel = functools.partial(_sym_conv3x3_relu_kernel, H=H, W=W)

    out = pl.pallas_call(
        kernel,
        out_shape=jax.ShapeDtypeStruct((2, N, Cout, HW), jnp.float32),
        grid_spec=pltpu.PrefetchScalarGridSpec(
            num_scalar_prefetch=0,
            grid=(N, 2),                                     # branch axis innermost:
            in_specs=[                                       # x block revisited for b=1
                pl.BlockSpec((1, Cin, HW), lambda n, s: (n, 0, 0)),
                pl.BlockSpec((Cout, KH * KW * Cin), lambda n, s: (0, 0)),
                pl.BlockSpec((Cout, 1), lambda n, s: (0, 0)),
            ],
            out_specs=pl.BlockSpec((1, 1, Cout, HW), lambda n, s: (s, n, 0, 0)),
            scratch_shapes=[pltpu.VMEM((Cin, 2 * L + HW), jnp.float32)],
        ),
        compiler_params=pltpu.CompilerParams(
            dimension_semantics=("parallel", "parallel")),
    )(x_flat, w_taps, b2)

    # TODO(synk): for much larger H*W, add an H-tile grid axis (halo-aware
    # index_map) so blocks stay well under the v7x 64 MiB VMEM budget.
    out = out.reshape(2, N, Cout, H, W)                      # free reshape
    return [out[0], out[1]]


def _reference(x_nchw, w, b):
    # Pure-JAX reference for the inner conv+relu (NCHW, padding=1).
    out = jax.lax.conv_general_dilated(
        x_nchw, w, window_strides=(1, 1), padding=((1, 1), (1, 1)),
        dimension_numbers=("NCHW", "OIHW", "NCHW"))
    return jnp.maximum(out + b.reshape(1, -1, 1, 1), 0.0)


if __name__ == "__main__":
    # Small shapes: batch=2, Cin=8, Cout=16, spatial 16x16.
    N, Cin, Cout, H, W = 2, 8, 16, 16, 16

    key = jax.random.PRNGKey(0)
    kx, kw, kb = jax.random.split(key, 3)

    x = jax.random.normal(kx, (N, Cin, H, W), dtype=jnp.float32)
    # Deterministic Conv2d-style init (uniform in +/- 1/sqrt(fan_in)).
    fan_in = Cin * KH * KW
    bound = 1.0 / math.sqrt(fan_in)
    w = jax.random.uniform(kw, (Cout, Cin, KH, KW), jnp.float32, -bound, bound)
    b = jax.random.uniform(kb, (Cout,), jnp.float32, -bound, bound)

    out_x, out_y = symmetric_out_model(x, w, b)
    out_x = jax.block_until_ready(out_x)
    out_y = jax.block_until_ready(out_y)

    # Check against pure-JAX reference (same semantics as the PyTorch module).
    ref_x = _reference(x, w, b)
    ref_y = _reference(jnp.flip(x, axis=2), w, b)
    assert jnp.allclose(out_x, ref_x, atol=1e-4, rtol=1e-4)
    assert jnp.allclose(out_y, ref_y, atol=1e-4, rtol=1e-4)

    print("KERNEL_OK")
</pallas_src>

<mosaic_0001>
module attributes {stable_mosaic.version = 11 : i64} {
  func.func @_sym_conv3x3_relu_kernel(%arg0: i32, %arg1: i32, %arg2: memref<1x8x256xf32, #tpu.memory_space<vmem>>, %arg3: memref<16x72xf32, #tpu.memory_space<vmem>>, %arg4: memref<16x1xf32, #tpu.memory_space<vmem>>, %arg5: memref<1x1x16x256xf32, #tpu.memory_space<vmem>>, %arg6: memref<8x290xf32, #tpu.memory_space<vmem>>) attributes {dimension_semantics = [#tpu.dimension_semantics<parallel>, #tpu.dimension_semantics<parallel>], iteration_bounds = array<i64: 2, 2>, scalar_prefetch = 0 : i64, scratch_operands = 1 : i64, tpu.core_type = #tpu.core_type<tc>, window_params = [{transform_indices = @transform_0, window_bounds = array<i64: 1, 8, 256>}, {pipeline_mode = #tpu.pipeline_mode<synchronous>, transform_indices = @transform_1, window_bounds = array<i64: 16, 72>}, {pipeline_mode = #tpu.pipeline_mode<synchronous>, transform_indices = @transform_2, window_bounds = array<i64: 16, 1>}, {transform_indices = @transform_3, window_bounds = array<i64: 1, 1, 16, 256>}]} {
    %c0 = arith.constant 0 : index
    %c0_0 = arith.constant 0 : index
    %c0_1 = arith.constant 0 : index
    %0 = vector.load %arg2[%c0, %c0_0, %c0_1] : memref<1x8x256xf32, #tpu.memory_space<vmem>>, vector<1x8x256xf32>
    %1 = vector.shape_cast %0 : vector<1x8x256xf32> to vector<8x256xf32>
    %cst = arith.constant 0.000000e+00 : f32
    %2 = vector.broadcast %cst : f32 to vector<8x17xf32>
    %c0_2 = arith.constant 0 : index
    %c0_3 = arith.constant 0 : index
    %3 = vector.load %arg6[%c0_2, %c0_3] : memref<8x290xf32, #tpu.memory_space<vmem>>, vector<8x17xf32>
    tpu.vector_store %arg6[%c0_2, %c0_3], %2 {strides = array<i32>} : memref<8x290xf32, #tpu.memory_space<vmem>>, vector<8x17xf32>,
    %cst_4 = arith.constant 0.000000e+00 : f32
    %4 = vector.broadcast %cst_4 : f32 to vector<8x17xf32>
    %c0_5 = arith.constant 0 : index
    %c273 = arith.constant 273 : index
    %5 = vector.load %arg6[%c0_5, %c273] : memref<8x290xf32, #tpu.memory_space<vmem>>, vector<8x17xf32>
    tpu.vector_store %arg6[%c0_5, %c273], %4 {strides = array<i32>} : memref<8x290xf32, #tpu.memory_space<vmem>>, vector<8x17xf32>,
    %c0_i32 = arith.constant 0 : i32
    %6 = arith.cmpi eq, %arg1, %c0_i32 : i32
    %7 = arith.extui %6 : i1 to i32
    %c0_i32_6 = arith.constant 0 : i32
    %8 = arith.cmpi ne, %7, %c0_i32_6 : i32
    scf.if %8 {
      %c0_22 = arith.constant 0 : index
      %c17 = arith.constant 17 : index
      %55 = vector.load %arg6[%c0_22, %c17] : memref<8x290xf32, #tpu.memory_space<vmem>>, vector<8x256xf32>
      tpu.vector_store %arg6[%c0_22, %c17], %1 {strides = array<i32>} : memref<8x290xf32, #tpu.memory_space<vmem>>, vector<8x256xf32>,
    } else {
    }
    %c0_i32_7 = arith.constant 0 : i32
    %9 = arith.cmpi ne, %arg1, %c0_i32_7 : i32
    %10 = arith.extui %9 : i1 to i32
    %c0_i32_8 = arith.constant 0 : i32
    %11 = arith.cmpi ne, %10, %c0_i32_8 : i32
    scf.if %11 {
      %55 = vector.extract_strided_slice %1 {offsets = [0, 240], sizes = [8, 16], strides = [1, 1]} : vector<8x256xf32> to vector<8x16xf32>
      %56 = vector.extract_strided_slice %1 {offsets = [0, 224], sizes = [8, 16], strides = [1, 1]} : vector<8x256xf32> to vector<8x16xf32>
      %57 = vector.extract_strided_slice %1 {offsets = [0, 208], sizes = [8, 16], strides = [1, 1]} : vector<8x256xf32> to vector<8x16xf32>
      %58 = vector.extract_strided_slice %1 {offsets = [0, 192], sizes = [8, 16], strides = [1, 1]} : vector<8x256xf32> to vector<8x16xf32>
      %59 = vector.extract_strided_slice %1 {offsets = [0, 176], sizes = [8, 16], strides = [1, 1]} : vector<8x256xf32> to vector<8x16xf32>
      %60 = vector.extract_strided_slice %1 {offsets = [0, 160], sizes = [8, 16], strides = [1, 1]} : vector<8x256xf32> to vector<8x16xf32>
      %61 = vector.extract_strided_slice %1 {offsets = [0, 144], sizes = [8, 16], strides = [1, 1]} : vector<8x256xf32> to vector<8x16xf32>
      %62 = vector.extract_strided_slice %1 {offsets = [0, 128], sizes = [8, 16], strides = [1, 1]} : vector<8x256xf32> to vector<8x16xf32>
      %63 = vector.extract_strided_slice %1 {offsets = [0, 112], sizes = [8, 16], strides = [1, 1]} : vector<8x256xf32> to vector<8x16xf32>
      %64 = vector.extract_strided_slice %1 {offsets = [0, 96], sizes = [8, 16], strides = [1, 1]} : vector<8x256xf32> to vector<8x16xf32>
      %65 = vector.extract_strided_slice %1 {offsets = [0, 80], sizes = [8, 16], strides = [1, 1]} : vector<8x256xf32> to vector<8x16xf32>
      %66 = vector.extract_strided_slice %1 {offsets = [0, 64], sizes = [8, 16], strides = [1, 1]} : vector<8x256xf32> to vector<8x16xf32>
      %67 = vector.extract_strided_slice %1 {offsets = [0, 48], sizes = [8, 16], strides = [1, 1]} : vector<8x256xf32> to vector<8x16xf32>
      %68 = vector.extract_strided_slice %1 {offsets = [0, 32], sizes = [8, 16], strides = [1, 1]} : vector<8x256xf32> to vector<8x16xf32>
      %69 = vector.extract_strided_slice %1 {offsets = [0, 16], sizes = [8, 16], strides = [1, 1]} : vector<8x256xf32> to vector<8x16xf32>
      %70 = vector.extract_strided_slice %1 {offsets = [0, 0], sizes = [8, 16], strides = [1, 1]} : vector<8x256xf32> to vector<8x16xf32>
      %71 = tpu.concatenate %55, %56, %57, %58, %59, %60, %61, %62, %63, %64, %65, %66, %67, %68, %69, %70 in 1 : vector<8x16xf32>, vector<8x16xf32>, vector<8x16xf32>, vector<8x16xf32>, vector<8x16xf32>, vector<8x16xf32>, vector<8x16xf32>, vector<8x16xf32>, vector<8x16xf32>, vector<8x16xf32>, vector<8x16xf32>, vector<8x16xf32>, vector<8x16xf32>, vector<8x16xf32>, vector<8x16xf32>, vector<8x16xf32> -> vector<8x256xf32>
      %c0_22 = arith.constant 0 : index
      %c17 = arith.constant 17 : index
      %72 = vector.load %arg6[%c0_22, %c17] : memref<8x290xf32, #tpu.memory_space<vmem>>, vector<8x256xf32>
      tpu.vector_store %arg6[%c0_22, %c17], %71 {strides = array<i32>} : memref<8x290xf32, #tpu.memory_space<vmem>>, vector<8x256xf32>,
    } else {
    }
    %12 = tpu.iota {dimensions = array<i32: 1>} : vector<1x16xi32>
    %c0_i32_9 = arith.constant 0 : i32
    %13 = vector.broadcast %c0_i32_9 : i32 to vector<1x16xi32>
    %14 = arith.cmpi sgt, %12, %13 : vector<1x16xi32>
    %15 = arith.extui %14 : vector<1x16xi1> to vector<1x16xi32>
    %16 = arith.sitofp %15 : vector<1x16xi32> to vector<1x16xf32>
    %17 = tpu.concatenate %16, %16, %16, %16, %16, %16, %16, %16, %16, %16, %16, %16, %16, %16, %16, %16 in 1 : vector<1x16xf32>, vector<1x16xf32>, vector<1x16xf32>, vector<1x16xf32>, vector<1x16xf32>, vector<1x16xf32>, vector<1x16xf32>, vector<1x16xf32>, vector<1x16xf32>, vector<1x16xf32>, vector<1x16xf32>, vector<1x16xf32>, vector<1x16xf32>, vector<1x16xf32>, vector<1x16xf32>, vector<1x16xf32> -> vector<1x256xf32>
    %c15_i32 = arith.constant 15 : i32
    %18 = vector.broadcast %c15_i32 : i32 to vector<1x16xi32>
    %19 = arith.cmpi slt, %12, %18 : vector<1x16xi32>
    %20 = arith.extui %19 : vector<1x16xi1> to vector<1x16xi32>
    %21 = arith.sitofp %20 : vector<1x16xi32> to vector<1x16xf32>
    %22 = tpu.concatenate %21, %21, %21, %21, %21, %21, %21, %21, %21, %21, %21, %21, %21, %21, %21, %21 in 1 : vector<1x16xf32>, vector<1x16xf32>, vector<1x16xf32>, vector<1x16xf32>, vector<1x16xf32>, vector<1x16xf32>, vector<1x16xf32>, vector<1x16xf32>, vector<1x16xf32>, vector<1x16xf32>, vector<1x16xf32>, vector<1x16xf32>, vector<1x16xf32>, vector<1x16xf32>, vector<1x16xf32>, vector<1x16xf32> -> vector<1x256xf32>
    %c0_10 = arith.constant 0 : index
    %c0_11 = arith.constant 0 : index
    %23 = vector.load %arg6[%c0_10, %c0_11] : memref<8x290xf32, #tpu.memory_space<vmem>>, vector<8x290xf32>
    %24 = vector.extract_strided_slice %23 {offsets = [0, 0], sizes = [8, 256], strides = [1, 1]} : vector<8x290xf32> to vector<8x256xf32>
    %25 = vector.broadcast %17 : vector<1x256xf32> to vector<8x256xf32>
    %26 = arith.mulf %24, %25 : vector<8x256xf32>
    %27 = vector.extract_strided_slice %23 {offsets = [0, 1], sizes = [8, 256], strides = [1, 1]} : vector<8x290xf32> to vector<8x256xf32>
    %28 = vector.extract_strided_slice %23 {offsets = [0, 2], sizes = [8, 256], strides = [1, 1]} : vector<8x290xf32> to vector<8x256xf32>
    %29 = vector.broadcast %22 : vector<1x256xf32> to vector<8x256xf32>
    %30 = arith.mulf %28, %29 : vector<8x256xf32>
    %31 = vector.extract_strided_slice %23 {offsets = [0, 16], sizes = [8, 256], strides = [1, 1]} : vector<8x290xf32> to vector<8x256xf32>
    %32 = vector.broadcast %17 : vector<1x256xf32> to vector<8x256xf32>
    %33 = arith.mulf %31, %32 : vector<8x256xf32>
    %34 = vector.extract_strided_slice %23 {offsets = [0, 17], sizes = [8, 256], strides = [1, 1]} : vector<8x290xf32> to vector<8x256xf32>
    %35 = vector.extract_strided_slice %23 {offsets = [0, 18], sizes = [8, 256], strides = [1, 1]} : vector<8x290xf32> to vector<8x256xf32>
    %36 = vector.broadcast %22 : vector<1x256xf32> to vector<8x256xf32>
    %37 = arith.mulf %35, %36 : vector<8x256xf32>
    %38 = vector.extract_strided_slice %23 {offsets = [0, 32], sizes = [8, 256], strides = [1, 1]} : vector<8x290xf32> to vector<8x256xf32>
    %39 = vector.broadcast %17 : vector<1x256xf32> to vector<8x256xf32>
    %40 = arith.mulf %38, %39 : vector<8x256xf32>
    %41 = vector.extract_strided_slice %23 {offsets = [0, 33], sizes = [8, 256], strides = [1, 1]} : vector<8x290xf32> to vector<8x256xf32>
    %42 = vector.extract_strided_slice %23 {offsets = [0, 34], sizes = [8, 256], strides = [1, 1]} : vector<8x290xf32> to vector<8x256xf32>
    %43 = vector.broadcast %22 : vector<1x256xf32> to vector<8x256xf32>
    %44 = arith.mulf %42, %43 : vector<8x256xf32>
    %45 = tpu.concatenate %26, %27, %30, %33, %34, %37, %40, %41, %44 in 0 : vector<8x256xf32>, vector<8x256xf32>, vector<8x256xf32>, vector<8x256xf32>, vector<8x256xf32>, vector<8x256xf32>, vector<8x256xf32>, vector<8x256xf32>, vector<8x256xf32> -> vector<72x256xf32>
    %c0_12 = arith.constant 0 : index
    %c0_13 = arith.constant 0 : index
    %46 = vector.load %arg3[%c0_12, %c0_13] : memref<16x72xf32, #tpu.memory_space<vmem>>, vector<16x72xf32>
    %cst_14 = arith.constant dense<0.000000e+00> : vector<16x256xf32>
    %47 = tpu.matmul %46, %45, %cst_14 {dimension_numbers = #tpu.dot_dimension_numbers<[1], [0], [0], [1], [0, 0, 1, 1], [], []>} : vector<16x72xf32>, vector<72x256xf32>, vector<16x256xf32> -> vector<16x256xf32>
    %c0_15 = arith.constant 0 : index
    %c0_16 = arith.constant 0 : index
    %48 = vector.load %arg4[%c0_15, %c0_16] : memref<16x1xf32, #tpu.memory_space<vmem>>, vector<16x1xf32>
    %49 = vector.broadcast %48 : vector<16x1xf32> to vector<16x256xf32>
    %50 = arith.addf %47, %49 : vector<16x256xf32>
    %cst_17 = arith.constant 0.000000e+00 : f32
    %51 = vector.broadcast %cst_17 : f32 to vector<16x256xf32>
    %52 = arith.maximumf %50, %51 : vector<16x256xf32>
    %53 = vector.shape_cast %52 : vector<16x256xf32> to vector<1x1x16x256xf32>
    %c0_18 = arith.constant 0 : index
    %c0_19 = arith.constant 0 : index
    %c0_20 = arith.constant 0 : index
    %c0_21 = arith.constant 0 : index
    %54 = vector.load %arg5[%c0_18, %c0_19, %c0_20, %c0_21] : memref<1x1x16x256xf32, #tpu.memory_space<vmem>>, vector<1x1x16x256xf32>
    tpu.vector_store %arg5[%c0_18, %c0_19, %c0_20, %c0_21], %53 {strides = array<i32>} : memref<1x1x16x256xf32, #tpu.memory_space<vmem>>, vector<1x1x16x256xf32>,
    return
  }
  func.func @transform_0(%arg0: i32, %arg1: i32) -> (i32, i32, i32) {
    %c0_i32 = arith.constant 0 : i32
    %c0_i32_0 = arith.constant 0 : i32
    %c0_i32_1 = arith.constant 0 : i32
    return %arg0, %c0_i32, %c0_i32_0 : i32, i32, i32
  }
  func.func @transform_1(%arg0: i32, %arg1: i32) -> (i32, i32) {
    %c0_i32 = arith.constant 0 : i32
    %c0_i32_0 = arith.constant 0 : i32
    %c0_i32_1 = arith.constant 0 : i32
    return %c0_i32, %c0_i32_0 : i32, i32
  }
  func.func @transform_2(%arg0: i32, %arg1: i32) -> (i32, i32) {
    %c0_i32 = arith.constant 0 : i32
    %c0_i32_0 = arith.constant 0 : i32
    %c0_i32_1 = arith.constant 0 : i32
    return %c0_i32, %c0_i32_0 : i32, i32
  }
  func.func @transform_3(%arg0: i32, %arg1: i32) -> (i32, i32, i32, i32) {
    %c0_i32 = arith.constant 0 : i32
    %c0_i32_0 = arith.constant 0 : i32
    %c0_i32_1 = arith.constant 0 : i32
    return %arg1, %arg0, %c0_i32, %c0_i32_0 : i32, i32, i32, i32
  }
}

</mosaic_0001>

<llo_original>
// kernel: squeeze.2
$region0: #{squeeze.2}
  %s0 = inlined_call_operand.vmem [shape: f32[1,2,16,256], index: 0, kind: input, shape index: {}]
  %s1 = inlined_call_operand.hbm [shape: f32[2,16,16,16], index: 1, kind: output, shape index: {}]
  $region1: #{squeeze.2} parent=0
    #allocation0 [shape = 'u8[262144]{0}', space=vmem, size = 0x40000, scoped, tag = 'operand span for operand 1']
    #allocation1 [shape = 's32[1]{0}', space=sflag, size = 0x4, scoped, tag = 'scoped memory for squeeze.2']
    %2 = vsyncpa [#allocation1], 0
    %v3 = vld [vmem:[%s0] sm:$0xff]
    %vm4 = vcmask 130048
    %5 = vst.msk [vmem:[#allocation0] ss:$16 sm:$0x3] %vm4, %v3
    %6 = vst.msk [vmem:[#allocation0] ss:$16 sm:$0xc] %vm4, %v3
    %7 = vst.msk [vmem:[#allocation0] ss:$16 sm:$0x30] %vm4, %v3
    %8 = vst.msk [vmem:[#allocation0] ss:$16 sm:$0xc0] %vm4, %v3
    %s9 = scalar_lea.vmem %s0, 8
    %v10 = vld [vmem:[%s9] sm:$0xff]
    %vm11 = vcmask 130048
    %s12 = scalar_lea.vmem [#allocation0], 8
    %13 = vst.msk [vmem:[%s12] ss:$16 sm:$0x3] %vm11, %v10
    %s14 = scalar_lea.vmem [#allocation0], 8
    %15 = vst.msk [vmem:[%s14] ss:$16 sm:$0xc] %vm11, %v10
    %s16 = scalar_lea.vmem [#allocation0], 8
    %17 = vst.msk [vmem:[%s16] ss:$16 sm:$0x30] %vm11, %v10
    %s18 = scalar_lea.vmem [#allocation0], 8
    %19 = vst.msk [vmem:[%s18] ss:$16 sm:$0xc0] %vm11, %v10
    %s20 = scalar_lea.vmem %s0, 16
    %v21 = vld [vmem:[%s20] sm:$0xff]
    %vm22 = vcmask 130048
    %s23 = scalar_lea.vmem [#allocation0], 128
    %24 = vst.msk [vmem:[%s23] ss:$16 sm:$0x3] %vm22, %v21
    %s25 = scalar_lea.vmem [#allocation0], 128
    %26 = vst.msk [vmem:[%s25] ss:$16 sm:$0xc] %vm22, %v21
    %s27 = scalar_lea.vmem [#allocation0], 128
    %28 = vst.msk [vmem:[%s27] ss:$16 sm:$0x30] %vm22, %v21
    %s29 = scalar_lea.vmem [#allocation0], 128
    %30 = vst.msk [vmem:[%s29] ss:$16 sm:$0xc0] %vm22, %v21
    %s31 = scalar_lea.vmem %s0, 24
    %v32 = vld [vmem:[%s31] sm:$0xff]
    %vm33 = vcmask 130048
    %s34 = scalar_lea.vmem [#allocation0], 136
    %35 = vst.msk [vmem:[%s34] ss:$16 sm:$0x3] %vm33, %v32
    %s36 = scalar_lea.vmem [#allocation0], 136
    %37 = vst.msk [vmem:[%s36] ss:$16 sm:$0xc] %vm33, %v32
    %s38 = scalar_lea.vmem [#allocation0], 136
    %39 = vst.msk [vmem:[%s38] ss:$16 sm:$0x30] %vm33, %v32
    %s40 = scalar_lea.vmem [#allocation0], 136
    %41 = vst.msk [vmem:[%s40] ss:$16 sm:$0xc0] %vm33, %v32
    %s42 = scalar_lea.vmem %s0, 32
    %v43 = vld [vmem:[%s42] sm:$0xff]
    %vm44 = vcmask 130048
    %s45 = scalar_lea.vmem [#allocation0], 256
    %46 = vst.msk [vmem:[%s45] ss:$16 sm:$0x3] %vm44, %v43
    %s47 = scalar_lea.vmem [#allocation0], 256
    %48 = vst.msk [vmem:[%s47] ss:$16 sm:$0xc] %vm44, %v43
    %s49 = scalar_lea.vmem [#allocation0], 256
    %50 = vst.msk [vmem:[%s49] ss:$16 sm:$0x30] %vm44, %v43
    %s51 = scalar_lea.vmem [#allocation0], 256
    %52 = vst.msk [vmem:[%s51] ss:$16 sm:$0xc0] %vm44, %v43
    %s53 = scalar_lea.vmem %s0, 40
    %v54 = vld [vmem:[%s53] sm:$0xff]
    %vm55 = vcmask 130048
    %s56 = scalar_lea.vmem [#allocation0], 264
    %57 = vst.msk [vmem:[%s56] ss:$16 sm:$0x3] %vm55, %v54
    %s58 = scalar_lea.vmem [#allocation0], 264
    %59 = vst.msk [vmem:[%s58] ss:$16 sm:$0xc] %vm55, %v54
    %s60 = scalar_lea.vmem [#allocation0], 264
    %61 = vst.msk [vmem:[%s60] ss:$16 sm:$0x30] %vm55, %v54
    %s62 = scalar_lea.vmem [#allocation0], 264
    %63 = vst.msk [vmem:[%s62] ss:$16 sm:$0xc0] %vm55, %v54
    %s64 = scalar_lea.vmem %s0, 48
    %v65 = vld [vmem:[%s64] sm:$0xff]
    %vm66 = vcmask 130048
    %s67 = scalar_lea.vmem [#allocation0], 384
    %68 = vst.msk [vmem:[%s67] ss:$16 sm:$0x3] %vm66, %v65
    %s69 = scalar_lea.vmem [#allocation0], 384
    %70 = vst.msk [vmem:[%s69] ss:$16 sm:$0xc] %vm66, %v65
    %s71 = scalar_lea.vmem [#allocation0], 384
    %72 = vst.msk [vmem:[%s71] ss:$16 sm:$0x30] %vm66, %v65
    %s73 = scalar_lea.vmem [#allocation0], 384
    %74 = vst.msk [vmem:[%s73] ss:$16 sm:$0xc0] %vm66, %v65
    %s75 = scalar_lea.vmem %s0, 56
    %v76 = vld [vmem:[%s75] sm:$0xff]
    %vm77 = vcmask 130048
    %s78 = scalar_lea.vmem [#allocation0], 392
    %79 = vst.msk [vmem:[%s78] ss:$16 sm:$0x3] %vm77, %v76
    %s80 = scalar_lea.vmem [#allocation0], 392
    %81 = vst.msk [vmem:[%s80] ss:$16 sm:$0xc] %vm77, %v76
    %s82 = scalar_lea.vmem [#allocation0], 392
    %83 = vst.msk [vmem:[%s82] ss:$16 sm:$0x30] %vm77, %v76
    %s84 = scalar_lea.vmem [#allocation0], 392
    %85 = vst.msk [vmem:[%s84] ss:$16 sm:$0xc0] %vm77, %v76
    %v86 = vld.sshfl [vmem:[%s0] sm:$0xff pattern:$0xb3a29180]
    %87 = vrot.lane.b32.xlu0 %v86, 112
    %v88 = vpop.permute.xlu0 %87
    %vm89 = vcmask 130048
    %s90 = scalar_lea.vmem [#allocation0], 1
    %91 = vst.msk [vmem:[%s90] ss:$8 sm:$0xf] %vm89, %v88
    %s92 = scalar_lea.vmem [#allocation0], 1
    %93 = vst.msk [vmem:[%s92] ss:$8 sm:$0xf0] %vm89, %v88
    %s94 = scalar_lea.vmem %s0, 4
    %v95 = vld.sshfl [vmem:[%s94] sm:$0xff pattern:$0xb3a29180]
    %96 = vrot.lane.b32.xlu0 %v95, 112
    %v97 = vpop.permute.xlu0 %96
    %vm98 = vcmask 130048
    %s99 = scalar_lea.vmem [#allocation0], 65
    %100 = vst.msk [vmem:[%s99] ss:$8 sm:$0xf] %vm98, %v97
    %s101 = scalar_lea.vmem [#allocation0], 65
    %102 = vst.msk [vmem:[%s101] ss:$8 sm:$0xf0] %vm98, %v97
    %s103 = scalar_lea.vmem %s0, 16
    %v104 = vld.sshfl [vmem:[%s103] sm:$0xff pattern:$0xb3a29180]
    %105 = vrot.lane.b32.xlu0 %v104, 112
    %v106 = vpop.permute.xlu0 %105
    %vm107 = vcmask 130048
    %s108 = scalar_lea.vmem [#allocation0], 129
    %109 = vst.msk [vmem:[%s108] ss:$8 sm:$0xf] %vm107, %v106
    %s110 = scalar_lea.vmem [#allocation0], 129
    %111 = vst.msk [vmem:[%s110] ss:$8 sm:$0xf0] %vm107, %v106
    %s112 = scalar_lea.vmem %s0, 20
    %v113 = vld.sshfl [vmem:[%s112] sm:$0xff pattern:$0xb3a29180]
    %114 = vrot.lane.b32.xlu0 %v113, 112
    %v115 = vpop.permute.xlu0 %114
    %vm116 = vcmask 130048
    %s117 = scalar_lea.vmem [#allocation0], 193
    %118 = vst.msk [vmem:[%s117] ss:$8 sm:$0xf] %vm116, %v115
    %s119 = scalar_lea.vmem [#allocation0], 193
    %120 = vst.msk [vmem:[%s119] ss:$8 sm:$0xf0] %vm116, %v115
    %s121 = scalar_lea.vmem %s0, 32
    %v122 = vld.sshfl [vmem:[%s121] sm:$0xff pattern:$0xb3a29180]
    %123 = vrot.lane.b32.xlu0 %v122, 112
    %v124 = vpop.permute.xlu0 %123
    %vm125 = vcmask 130048
    %s126 = scalar_lea.vmem [#allocation0], 257
    %127 = vst.msk [vmem:[%s126] ss:$8 sm:$0xf] %vm125, %v124
    %s128 = scalar_lea.vmem [#allocation0], 257
    %129 = vst.msk [vmem:[%s128] ss:$8 sm:$0xf0] %vm125, %v124
    %s130 = scalar_lea.vmem %s0, 36
    %v131 = vld.sshfl [vmem:[%s130] sm:$0xff pattern:$0xb3a29180]
    %132 = vrot.lane.b32.xlu0 %v131, 112
    %v133 = vpop.permute.xlu0 %132
    %vm134 = vcmask 130048
    %s135 = scalar_lea.vmem [#allocation0], 321
    %136 = vst.msk [vmem:[%s135] ss:$8 sm:$0xf] %vm134, %v133
    %s137 = scalar_lea.vmem [#allocation0], 321
    %138 = vst.msk [vmem:[%s137] ss:$8 sm:$0xf0] %vm134, %v133
    %s139 = scalar_lea.vmem %s0, 48
    %v140 = vld.sshfl [vmem:[%s139] sm:$0xff pattern:$0xb3a29180]
    %141 = vrot.lane.b32.xlu0 %v140, 112
    %v142 = vpop.permute.xlu0 %141
    %vm143 = vcmask 130048
    %s144 = scalar_lea.vmem [#allocation0], 385
    %145 = vst.msk [vmem:[%s144] ss:$8 sm:$0xf] %vm143, %v142
    %s146 = scalar_lea.vmem [#allocation0], 385
    %147 = vst.msk [vmem:[%s146] ss:$8 sm:$0xf0] %vm143, %v142
    %s148 = scalar_lea.vmem %s0, 52
    %v149 = vld.sshfl [vmem:[%s148] sm:$0xff pattern:$0xb3a29180]
    %150 = vrot.lane.b32.xlu0 %v149, 112
    %v151 = vpop.permute.xlu0 %150
    %vm152 = vcmask 130048
    %s153 = scalar_lea.vmem [#allocation0], 449
    %154 = vst.msk [vmem:[%s153] ss:$8 sm:$0xf] %vm152, %v151
    %s155 = scalar_lea.vmem [#allocation0], 449
    %156 = vst.msk [vmem:[%s155] ss:$8 sm:$0xf0] %vm152, %v151
    %v157 = vld.sshfl [vmem:[%s0] sm:$0xff pattern:$0xb3a29180]
    %158 = vrot.lane.b32.xlu0 %v157, 96
    %v159 = vpop.permute.xlu0 %158
    %vm160 = vcmask 130048
    %s161 = scalar_lea.vmem [#allocation0], 2
    %162 = vst.msk [vmem:[%s161] ss:$8 sm:$0xf] %vm160, %v159
    %s163 = scalar_lea.vmem [#allocation0], 2
    %164 = vst.msk [vmem:[%s163] ss:$8 sm:$0xf0] %vm160, %v159
    %s165 = scalar_lea.vmem %s0, 4
    %v166 = vld.sshfl [vmem:[%s165] sm:$0xff pattern:$0xb3a29180]
    %167 = vrot.lane.b32.xlu0 %v166, 96
    %v168 = vpop.permute.xlu0 %167
    %vm169 = vcmask 130048
    %s170 = scalar_lea.vmem [#allocation0], 66
    %171 = vst.msk [vmem:[%s170] ss:$8 sm:$0xf] %vm169, %v168
    %s172 = scalar_lea.vmem [#allocation0], 66
    %173 = vst.msk [vmem:[%s172] ss:$8 sm:$0xf0] %vm169, %v168
    %s174 = scalar_lea.vmem %s0, 16
    %v175 = vld.sshfl [vmem:[%s174] sm:$0xff pattern:$0xb3a29180]
    %176 = vrot.lane.b32.xlu0 %v175, 96
    %v177 = vpop.permute.xlu0 %176
    %vm178 = vcmask 130048
    %s179 = scalar_lea.vmem [#allocation0], 130
    %180 = vst.msk [vmem:[%s179] ss:$8 sm:$0xf] %vm178, %v177
    %s181 = scalar_lea.vmem [#allocation0], 130
    %182 = vst.msk [vmem:[%s181] ss:$8 sm:$0xf0] %vm178, %v177
    %s183 = scalar_lea.vmem %s0, 20
    %v184 = vld.sshfl [vmem:[%s183] sm:$0xff pattern:$0xb3a29180]
    %185 = vrot.lane.b32.xlu0 %v184, 96
    %v186 = vpop.permute.xlu0 %185
    %vm187 = vcmask 130048
    %s188 = scalar_lea.vmem [#allocation0], 194
    %189 = vst.msk [vmem:[%s188] ss:$8 sm:$0xf] %vm187, %v186
    %s190 = scalar_lea.vmem [#allocation0], 194
    %191 = vst.msk [vmem:[%s190] ss:$8 sm:$0xf0] %vm187, %v186
    %s192 = scalar_lea.vmem %s0, 32
    %v193 = vld.sshfl [vmem:[%s192] sm:$0xff pattern:$0xb3a29180]
    %194 = vrot.lane.b32.xlu0 %v193, 96
    %v195 = vpop.permute.xlu0 %194
    %vm196 = vcmask 130048
    %s197 = scalar_lea.vmem [#allocation0], 258
    %198 = vst.msk [vmem:[%s197] ss:$8 sm:$0xf] %vm196, %v195
    %s199 = scalar_lea.vmem [#allocation0], 258
    %200 = vst.msk [vmem:[%s199] ss:$8 sm:$0xf0] %vm196, %v195
    %s201 = scalar_lea.vmem %s0, 36
    %v202 = vld.sshfl [vmem:[%s201] sm:$0xff pattern:$0xb3a29180]
    %203 = vrot.lane.b32.xlu0 %v202, 96
    %v204 = vpop.permute.xlu0 %203
    %vm205 = vcmask 130048
    %s206 = scalar_lea.vmem [#allocation0], 322
    %207 = vst.msk [vmem:[%s206] ss:$8 sm:$0xf] %vm205, %v204
    %s208 = scalar_lea.vmem [#allocation0], 322
    %209 = vst.msk [vmem:[%s208] ss:$8 sm:$0xf0] %vm205, %v204
    %s210 = scalar_lea.vmem %s0, 48
    %v211 = vld.sshfl [vmem:[%s210] sm:$0xff pattern:$0xb3a29180]
    %212 = vrot.lane.b32.xlu0 %v211, 96
    %v213 = vpop.permute.xlu0 %212
    %vm214 = vcmask 130048
    %s215 = scalar_lea.vmem [#allocation0], 386
    %216 = vst.msk [vmem:[%s215] ss:$8 sm:$0xf] %vm214, %v213
    %s217 = scalar_lea.vmem [#allocation0], 386
    %218 = vst.msk [vmem:[%s217] ss:$8 sm:$0xf0] %vm214, %v213
    %s219 = scalar_lea.vmem %s0, 52
    %v220 = vld.sshfl [vmem:[%s219] sm:$0xff pattern:$0xb3a29180]
    %221 = vrot.lane.b32.xlu0 %v220, 96
    %v222 = vpop.permute.xlu0 %221
    %vm223 = vcmask 130048
    %s224 = scalar_lea.vmem [#allocation0], 450
    %225 = vst.msk [vmem:[%s224] ss:$8 sm:$0xf] %vm223, %v222
    %s226 = scalar_lea.vmem [#allocation0], 450
    %227 = vst.msk [vmem:[%s226] ss:$8 sm:$0xf0] %vm223, %v222
    %v228 = vld.sshfl [vmem:[%s0] sm:$0xff pattern:$0xb3a29180]
    %229 = vrot.lane.b32.xlu0 %v228, 80
    %v230 = vpop.permute.xlu0 %229
    %vm231 = vcmask 130048
    %s232 = scalar_lea.vmem [#allocation0], 3
    %233 = vst.msk [vmem:[%s232] ss:$8 sm:$0xf] %vm231, %v230
    %s234 = scalar_lea.vmem [#allocation0], 3
    %235 = vst.msk [vmem:[%s234] ss:$8 sm:$0xf0] %vm231, %v230
    %s236 = scalar_lea.vmem %s0, 4
    %v237 = vld.sshfl [vmem:[%s236] sm:$0xff pattern:$0xb3a29180]
    %238 = vrot.lane.b32.xlu0 %v237, 80
    %v239 = vpop.permute.xlu0 %238
    %vm240 = vcmask 130048
    %s241 = scalar_lea.vmem [#allocation0], 67
    %242 = vst.msk [vmem:[%s241] ss:$8 sm:$0xf] %vm240, %v239
    %s243 = scalar_lea.vmem [#allocation0], 67
    %244 = vst.msk [vmem:[%s243] ss:$8 sm:$0xf0] %vm240, %v239
    %s245 = scalar_lea.vmem %s0, 16
    %v246 = vld.sshfl [vmem:[%s245] sm:$0xff pattern:$0xb3a29180]
    %247 = vrot.lane.b32.xlu0 %v246, 80
    %v248 = vpop.permute.xlu0 %247
    %vm249 = vcmask 130048
    %s250 = scalar_lea.vmem [#allocation0], 131
    %251 = vst.msk [vmem:[%s250] ss:$8 sm:$0xf] %vm249, %v248
    %s252 = scalar_lea.vmem [#allocation0], 131
    %253 = vst.msk [vmem:[%s252] ss:$8 sm:$0xf0] %vm249, %v248
    %s254 = scalar_lea.vmem %s0, 20
    %v255 = vld.sshfl [vmem:[%s254] sm:$0xff pattern:$0xb3a29180]
    %256 = vrot.lane.b32.xlu0 %v255, 80
    %v257 = vpop.permute.xlu0 %256
    %vm258 = vcmask 130048
    %s259 = scalar_lea.vmem [#allocation0], 195
    %260 = vst.msk [vmem:[%s259] ss:$8 sm:$0xf] %vm258, %v257
    %s261 = scalar_lea.vmem [#allocation0], 195
    %262 = vst.msk [vmem:[%s261] ss:$8 sm:$0xf0] %vm258, %v257
    %s263 = scalar_lea.vmem %s0, 32
    %v264 = vld.sshfl [vmem:[%s263] sm:$0xff pattern:$0xb3a29180]
    %265 = vrot.lane.b32.xlu0 %v264, 80
    %v266 = vpop.permute.xlu0 %265
    %vm267 = vcmask 130048
    %s268 = scalar_lea.vmem [#allocation0], 259
    %269 = vst.msk [vmem:[%s268] ss:$8 sm:$0xf] %vm267, %v266
    %s270 = scalar_lea.vmem [#allocation0], 259
    %271 = vst.msk [vmem:[%s270] ss:$8 sm:$0xf0] %vm267, %v266
    %s272 = scalar_lea.vmem %s0, 36
    %v273 = vld.sshfl [vmem:[%s272] sm:$0xff pattern:$0xb3a29180]
    %274 = vrot.lane.b32.xlu0 %v273, 80
    %v275 = vpop.permute.xlu0 %274
    %vm276 = vcmask 130048
    %s277 = scalar_lea.vmem [#allocation0], 323
    %278 = vst.msk [vmem:[%s277] ss:$8 sm:$0xf] %vm276, %v275
    %s279 = scalar_lea.vmem [#allocation0], 323
    %280 = vst.msk [vmem:[%s279] ss:$8 sm:$0xf0] %vm276, %v275
    %s281 = scalar_lea.vmem %s0, 48
    %v282 = vld.sshfl [vmem:[%s281] sm:$0xff pattern:$0xb3a29180]
    %283 = vrot.lane.b32.xlu0 %v282, 80
    %v284 = vpop.permute.xlu0 %283
    %vm285 = vcmask 130048
    %s286 = scalar_lea.vmem [#allocation0], 387
    %287 = vst.msk [vmem:[%s286] ss:$8 sm:$0xf] %vm285, %v284
    %s288 = scalar_lea.vmem [#allocation0], 387
    %289 = vst.msk [vmem:[%s288] ss:$8 sm:$0xf0] %vm285, %v284
    %s290 = scalar_lea.vmem %s0, 52
    %v291 = vld.sshfl [vmem:[%s290] sm:$0xff pattern:$0xb3a29180]
    %292 = vrot.lane.b32.xlu0 %v291, 80
    %v293 = vpop.permute.xlu0 %292
    %vm294 = vcmask 130048
    %s295 = scalar_lea.vmem [#allocation0], 451
    %296 = vst.msk [vmem:[%s295] ss:$8 sm:$0xf] %vm294, %v293
    %s297 = scalar_lea.vmem [#allocation0], 451
    %298 = vst.msk [vmem:[%s297] ss:$8 sm:$0xf0] %vm294, %v293
    %v299 = vld.sshfl [vmem:[%s0] sm:$0xff pattern:$0xb3a29180]
    %300 = vrot.lane.b32.xlu0 %v299, 64
    %v301 = vpop.permute.xlu0 %300
    %vm302 = vcmask 130048
    %s303 = scalar_lea.vmem [#allocation0], 4
    %304 = vst.msk [vmem:[%s303] ss:$8 sm:$0xf] %vm302, %v301
    %s305 = scalar_lea.vmem [#allocation0], 4
    %306 = vst.msk [vmem:[%s305] ss:$8 sm:$0xf0] %vm302, %v301
    %s307 = scalar_lea.vmem %s0, 4
    %v308 = vld.sshfl [vmem:[%s307] sm:$0xff pattern:$0xb3a29180]
    %309 = vrot.lane.b32.xlu0 %v308, 64
    %v310 = vpop.permute.xlu0 %309
    %vm311 = vcmask 130048
    %s312 = scalar_lea.vmem [#allocation0], 68
    %313 = vst.msk [vmem:[%s312] ss:$8 sm:$0xf] %vm311, %v310
    %s314 = scalar_lea.vmem [#allocation0], 68
    %315 = vst.msk [vmem:[%s314] ss:$8 sm:$0xf0] %vm311, %v310
    %s316 = scalar_lea.vmem %s0, 16
    %v317 = vld.sshfl [vmem:[%s316] sm:$0xff pattern:$0xb3a29180]
    %318 = vrot.lane.b32.xlu0 %v317, 64
    %v319 = vpop.permute.xlu0 %318
    %vm320 = vcmask 130048
    %s321 = scalar_lea.vmem [#allocation0], 132
    %322 = vst.msk [vmem:[%s321] ss:$8 sm:$0xf] %vm320, %v319
    %s323 = scalar_lea.vmem [#allocation0], 132
    %324 = vst.msk [vmem:[%s323] ss:$8 sm:$0xf0] %vm320, %v319
    %s325 = scalar_lea.vmem %s0, 20
    %v326 = vld.sshfl [vmem:[%s325] sm:$0xff pattern:$0xb3a29180]
    %327 = vrot.lane.b32.xlu0 %v326, 64
    %v328 = vpop.permute.xlu0 %327
    %vm329 = vcmask 130048
    %s330 = scalar_lea.vmem [#allocation0], 196
    %331 = vst.msk [vmem:[%s330] ss:$8 sm:$0xf] %vm329, %v328
    %s332 = scalar_lea.vmem [#allocation0], 196
    %333 = vst.msk [vmem:[%s332] ss:$8 sm:$0xf0] %vm329, %v328
    %s334 = scalar_lea.vmem %s0, 32
    %v335 = vld.sshfl [vmem:[%s334] sm:$0xff pattern:$0xb3a29180]
    %336 = vrot.lane.b32.xlu0 %v335, 64
    %v337 = vpop.permute.xlu0 %336
    %vm338 = vcmask 130048
    %s339 = scalar_lea.vmem [#allocation0], 260
    %340 = vst.msk [vmem:[%s339] ss:$8 sm:$0xf] %vm338, %v337
    %s341 = scalar_lea.vmem [#allocation0], 260
    %342 = vst.msk [vmem:[%s341] ss:$8 sm:$0xf0] %vm338, %v337
    %s343 = scalar_lea.vmem %s0, 36
    %v344 = vld.sshfl [vmem:[%s343] sm:$0xff pattern:$0xb3a29180]
    %345 = vrot.lane.b32.xlu0 %v344, 64
    %v346 = vpop.permute.xlu0 %345
    %vm347 = vcmask 130048
    %s348 = scalar_lea.vmem [#allocation0], 324
    %349 = vst.msk [vmem:[%s348] ss:$8 sm:$0xf] %vm347, %v346
    %s350 = scalar_lea.vmem [#allocation0], 324
    %351 = vst.msk [vmem:[%s350] ss:$8 sm:$0xf0] %vm347, %v346
    %s352 = scalar_lea.vmem %s0, 48
    %v353 = vld.sshfl [vmem:[%s352] sm:$0xff pattern:$0xb3a29180]
    %354 = vrot.lane.b32.xlu0 %v353, 64
    %v355 = vpop.permute.xlu0 %354
    %vm356 = vcmask 130048
    %s357 = scalar_lea.vmem [#allocation0], 388
    %358 = vst.msk [vmem:[%s357] ss:$8 sm:$0xf] %vm356, %v355
    %s359 = scalar_lea.vmem [#allocation0], 388
    %360 = vst.msk [vmem:[%s359] ss:$8 sm:$0xf0] %vm356, %v355
    %s361 = scalar_lea.vmem %s0, 52
    %v362 = vld.sshfl [vmem:[%s361] sm:$0xff pattern:$0xb3a29180]
    %363 = vrot.lane.b32.xlu0 %v362, 64
    %v364 = vpop.permute.xlu0 %363
    %vm365 = vcmask 130048
    %s366 = scalar_lea.vmem [#allocation0], 452
    %367 = vst.msk [vmem:[%s366] ss:$8 sm:$0xf] %vm365, %v364
    %s368 = scalar_lea.vmem [#allocation0], 452
    %369 = vst.msk [vmem:[%s368] ss:$8 sm:$0xf0] %vm365, %v364
    %v370 = vld.sshfl [vmem:[%s0] sm:$0xff pattern:$0xb3a29180]
    %371 = vrot.lane.b32.xlu0 %v370, 48
    %v372 = vpop.permute.xlu0 %371
    %vm373 = vcmask 130048
    %s374 = scalar_lea.vmem [#allocation0], 5
    %375 = vst.msk [vmem:[%s374] ss:$8 sm:$0xf] %vm373, %v372
    %s376 = scalar_lea.vmem [#allocation0], 5
    %377 = vst.msk [vmem:[%s376] ss:$8 sm:$0xf0] %vm373, %v372
    %s378 = scalar_lea.vmem %s0, 4
    %v379 = vld.sshfl [vmem:[%s378] sm:$0xff pattern:$0xb3a29180]
    %380 = vrot.lane.b32.xlu0 %v379, 48
    %v381 = vpop.permute.xlu0 %380
    %vm382 = vcmask 130048
    %s383 = scalar_lea.vmem [#allocation0], 69
    %384 = vst.msk [vmem:[%s383] ss:$8 sm:$0xf] %vm382, %v381
    %s385 = scalar_lea.vmem [#allocation0], 69
    %386 = vst.msk [vmem:[%s385] ss:$8 sm:$0xf0] %vm382, %v381
    %s387 = scalar_lea.vmem %s0, 16
    %v388 = vld.sshfl [vmem:[%s387] sm:$0xff pattern:$0xb3a29180]
    %389 = vrot.lane.b32.xlu0 %v388, 48
    %v390 = vpop.permute.xlu0 %389
    %vm391 = vcmask 130048
    %s392 = scalar_lea.vmem [#allocation0], 133
    %393 = vst.msk [vmem:[%s392] ss:$8 sm:$0xf] %vm391, %v390
    %s394 = scalar_lea.vmem [#allocation0], 133
    %395 = vst.msk [vmem:[%s394] ss:$8 sm:$0xf0] %vm391, %v390
    %s396 = scalar_lea.vmem %s0, 20
    %v397 = vld.sshfl [vmem:[%s396] sm:$0xff pattern:$0xb3a29180]
    %398 = vrot.lane.b32.xlu0 %v397, 48
    %v399 = vpop.permute.xlu0 %398
    %vm400 = vcmask 130048
    %s401 = scalar_lea.vmem [#allocation0], 197
    %402 = vst.msk [vmem:[%s401] ss:$8 sm:$0xf] %vm400, %v399
    %s403 = scalar_lea.vmem [#allocation0], 197
    %404 = vst.msk [vmem:[%s403] ss:$8 sm:$0xf0] %vm400, %v399
    %s405 = scalar_lea.vmem %s0, 32
    %v406 = vld.sshfl [vmem:[%s405] sm:$0xff pattern:$0xb3a29180]
    %407 = vrot.lane.b32.xlu0 %v406, 48
    %v408 = vpop.permute.xlu0 %407
    %vm409 = vcmask 130048
    %s410 = scalar_lea.vmem [#allocation0], 261
    %411 = vst.msk [vmem:[%s410] ss:$8 sm:$0xf] %vm409, %v408
    %s412 = scalar_lea.vmem [#allocation0], 261
    %413 = vst.msk [vmem:[%s412] ss:$8 sm:$0xf0] %vm409, %v408
    %s414 = scalar_lea.vmem %s0, 36
    %v415 = vld.sshfl [vmem:[%s414] sm:$0xff pattern:$0xb3a29180]
    %416 = vrot.lane.b32.xlu0 %v415, 48
    %v417 = vpop.permute.xlu0 %416
    %vm418 = vcmask 130048
    %s419 = scalar_lea.vmem [#allocation0], 325
    %420 = vst.msk [vmem:[%s419] ss:$8 sm:$0xf] %vm418, %v417
    %s421 = scalar_lea.vmem [#allocation0], 325
    %422 = vst.msk [vmem:[%s421] ss:$8 sm:$0xf0] %vm418, %v417
    %s423 = scalar_lea.vmem %s0, 48
    %v424 = vld.sshfl [vmem:[%s423] sm:$0xff pattern:$0xb3a29180]
    %425 = vrot.lane.b32.xlu0 %v424, 48
    %v426 = vpop.permute.xlu0 %425
    %vm427 = vcmask 130048
    %s428 = scalar_lea.vmem [#allocation0], 389
    %429 = vst.msk [vmem:[%s428] ss:$8 sm:$0xf] %vm427, %v426
    %s430 = scalar_lea.vmem [#allocation0], 389
    %431 = vst.msk [vmem:[%s430] ss:$8 sm:$0xf0] %vm427, %v426
    %s432 = scalar_lea.vmem %s0, 52
    %v433 = vld.sshfl [vmem:[%s432] sm:$0xff pattern:$0xb3a29180]
    %434 = vrot.lane.b32.xlu0 %v433, 48
    %v435 = vpop.permute.xlu0 %434
    %vm436 = vcmask 130048
    %s437 = scalar_lea.vmem [#allocation0], 453
    %438 = vst.msk [vmem:[%s437] ss:$8 sm:$0xf] %vm436, %v435
    %s439 = scalar_lea.vmem [#allocation0], 453
    %440 = vst.msk [vmem:[%s439] ss:$8 sm:$0xf0] %vm436, %v435
    %v441 = vld.sshfl [vmem:[%s0] sm:$0xff pattern:$0xb3a29180]
    %442 = vrot.lane.b32.xlu0 %v441, 32
    %v443 = vpop.permute.xlu0 %442
    %vm444 = vcmask 130048
    %s445 = scalar_lea.vmem [#allocation0], 6
    %446 = vst.msk [vmem:[%s445] ss:$8 sm:$0xf] %vm444, %v443
    %s447 = scalar_lea.vmem [#allocation0], 6
    %448 = vst.msk [vmem:[%s447] ss:$8 sm:$0xf0] %vm444, %v443
    %s449 = scalar_lea.vmem %s0, 4
    %v450 = vld.sshfl [vmem:[%s449] sm:$0xff pattern:$0xb3a29180]
    %451 = vrot.lane.b32.xlu0 %v450, 32
    %v452 = vpop.permute.xlu0 %451
    %vm453 = vcmask 130048
    %s454 = scalar_lea.vmem [#allocation0], 70
    %455 = vst.msk [vmem:[%s454] ss:$8 sm:$0xf] %vm453, %v452
    %s456 = scalar_lea.vmem [#allocation0], 70
    %457 = vst.msk [vmem:[%s456] ss:$8 sm:$0xf0] %vm453, %v452
    %s458 = scalar_lea.vmem %s0, 16
    %v459 = vld.sshfl [vmem:[%s458] sm:$0xff pattern:$0xb3a29180]
    %460 = vrot.lane.b32.xlu0 %v459, 32
    %v461 = vpop.permute.xlu0 %460
    %vm462 = vcmask 130048
    %s463 = scalar_lea.vmem [#allocation0], 134
    %464 = vst.msk [vmem:[%s463] ss:$8 sm:$0xf] %vm462, %v461
    %s465 = scalar_lea.vmem [#allocation0], 134
    %466 = vst.msk [vmem:[%s465] ss:$8 sm:$0xf0] %vm462, %v461
    %s467 = scalar_lea.vmem %s0, 20
    %v468 = vld.sshfl [vmem:[%s467] sm:$0xff pattern:$0xb3a29180]
    %469 = vrot.lane.b32.xlu0 %v468, 32
    %v470 = vpop.permute.xlu0 %469
    %vm471 = vcmask 130048
    %s472 = scalar_lea.vmem [#allocation0], 198
    %473 = vst.msk [vmem:[%s472] ss:$8 sm:$0xf] %vm471, %v470
    %s474 = scalar_lea.vmem [#allocation0], 198
    %475 = vst.msk [vmem:[%s474] ss:$8 sm:$0xf0] %vm471, %v470
    %s476 = scalar_lea.vmem %s0, 32
    %v477 = vld.sshfl [vmem:[%s476] sm:$0xff pattern:$0xb3a29180]
    %478 = vrot.lane.b32.xlu0 %v477, 32
    %v479 = vpop.permute.xlu0 %478
    %vm480 = vcmask 130048
    %s481 = scalar_lea.vmem [#allocation0], 262
    %482 = vst.msk [vmem:[%s481] ss:$8 sm:$0xf] %vm480, %v479
    %s483 = scalar_lea.vmem [#allocation0], 262
    %484 = vst.msk [vmem:[%s483] ss:$8 sm:$0xf0] %vm480, %v479
    %s485 = scalar_lea.vmem %s0, 36
    %v486 = vld.sshfl [vmem:[%s485] sm:$0xff pattern:$0xb3a29180]
    %487 = vrot.lane.b32.xlu0 %v486, 32
    %v488 = vpop.permute.xlu0 %487
    %vm489 = vcmask 130048
    %s490 = scalar_lea.vmem [#allocation0], 326
    %491 = vst.msk [vmem:[%s490] ss:$8 sm:$0xf] %vm489, %v488
    %s492 = scalar_lea.vmem [#allocation0], 326
    %493 = vst.msk [vmem:[%s492] ss:$8 sm:$0xf0] %vm489, %v488
    %s494 = scalar_lea.vmem %s0, 48
    %v495 = vld.sshfl [vmem:[%s494] sm:$0xff pattern:$0xb3a29180]
    %496 = vrot.lane.b32.xlu0 %v495, 32
    %v497 = vpop.permute.xlu0 %496
    %vm498 = vcmask 130048
    %s499 = scalar_lea.vmem [#allocation0], 390
    %500 = vst.msk [vmem:[%s499] ss:$8 sm:$0xf] %vm498, %v497
    %s501 = scalar_lea.vmem [#allocation0], 390
    %502 = vst.msk [vmem:[%s501] ss:$8 sm:$0xf0] %vm498, %v497
    %s503 = scalar_lea.vmem %s0, 52
    %v504 = vld.sshfl [vmem:[%s503] sm:$0xff pattern:$0xb3a29180]
    %505 = vrot.lane.b32.xlu0 %v504, 32
    %v506 = vpop.permute.xlu0 %505
    %vm507 = vcmask 130048
    %s508 = scalar_lea.vmem [#allocation0], 454
    %509 = vst.msk [vmem:[%s508] ss:$8 sm:$0xf] %vm507, %v506
    %s510 = scalar_lea.vmem [#allocation0], 454
    %511 = vst.msk [vmem:[%s510] ss:$8 sm:$0xf0] %vm507, %v506
    %v512 = vld.sshfl [vmem:[%s0] sm:$0xff pattern:$0xb3a29180]
    %513 = vrot.lane.b32.xlu0 %v512, 16
    %v514 = vpop.permute.xlu0 %513
    %vm515 = vcmask 130048
    %s516 = scalar_lea.vmem [#allocation0], 7
    %517 = vst.msk [vmem:[%s516] ss:$8 sm:$0xf] %vm515, %v514
    %s518 = scalar_lea.vmem [#allocation0], 7
    %519 = vst.msk [vmem:[%s518] ss:$8 sm:$0xf0] %vm515, %v514
    %s520 = scalar_lea.vmem %s0, 4
    %v521 = vld.sshfl [vmem:[%s520] sm:$0xff pattern:$0xb3a29180]
    %522 = vrot.lane.b32.xlu0 %v521, 16
    %v523 = vpop.permute.xlu0 %522
    %vm524 = vcmask 130048
    %s525 = scalar_lea.vmem [#allocation0], 71
    %526 = vst.msk [vmem:[%s525] ss:$8 sm:$0xf] %vm524, %v523
    %s527 = scalar_lea.vmem [#allocation0], 71
    %528 = vst.msk [vmem:[%s527] ss:$8 sm:$0xf0] %vm524, %v523
    %s529 = scalar_lea.vmem %s0, 16
    %v530 = vld.sshfl [vmem:[%s529] sm:$0xff pattern:$0xb3a29180]
    %531 = vrot.lane.b32.xlu0 %v530, 16
    %v532 = vpop.permute.xlu0 %531
    %vm533 = vcmask 130048
    %s534 = scalar_lea.vmem [#allocation0], 135
    %535 = vst.msk [vmem:[%s534] ss:$8 sm:$0xf] %vm533, %v532
    %s536 = scalar_lea.vmem [#allocation0], 135
    %537 = vst.msk [vmem:[%s536] ss:$8 sm:$0xf0] %vm533, %v532
    %s538 = scalar_lea.vmem %s0, 20
    %v539 = vld.sshfl [vmem:[%s538] sm:$0xff pattern:$0xb3a29180]
    %540 = vrot.lane.b32.xlu0 %v539, 16
    %v541 = vpop.permute.xlu0 %540
    %vm542 = vcmask 130048
    %s543 = scalar_lea.vmem [#allocation0], 199
    %544 = vst.msk [vmem:[%s543] ss:$8 sm:$0xf] %vm542, %v541
    %s545 = scalar_lea.vmem [#allocation0], 199
    %546 = vst.msk [vmem:[%s545] ss:$8 sm:$0xf0] %vm542, %v541
    %s547 = scalar_lea.vmem %s0, 32
    %v548 = vld.sshfl [vmem:[%s547] sm:$0xff pattern:$0xb3a29180]
    %549 = vrot.lane.b32.xlu0 %v548, 16
    %v550 = vpop.permute.xlu0 %549
    %vm551 = vcmask 130048
    %s552 = scalar_lea.vmem [#allocation0], 263
    %553 = vst.msk [vmem:[%s552] ss:$8 sm:$0xf] %vm551, %v550
    %s554 = scalar_lea.vmem [#allocation0], 263
    %555 = vst.msk [vmem:[%s554] ss:$8 sm:$0xf0] %vm551, %v550
    %s556 = scalar_lea.vmem %s0, 36
    %v557 = vld.sshfl [vmem:[%s556] sm:$0xff pattern:$0xb3a29180]
    %558 = vrot.lane.b32.xlu0 %v557, 16
    %v559 = vpop.permute.xlu0 %558
    %vm560 = vcmask 130048
    %s561 = scalar_lea.vmem [#allocation0], 327
    %562 = vst.msk [vmem:[%s561] ss:$8 sm:$0xf] %vm560, %v559
    %s563 = scalar_lea.vmem [#allocation0], 327
    %564 = vst.msk [vmem:[%s563] ss:$8 sm:$0xf0] %vm560, %v559
    %s565 = scalar_lea.vmem %s0, 48
    %v566 = vld.sshfl [vmem:[%s565] sm:$0xff pattern:$0xb3a29180]
    %567 = vrot.lane.b32.xlu0 %v566, 16
    %v568 = vpop.permute.xlu0 %567
    %vm569 = vcmask 130048
    %s570 = scalar_lea.vmem [#allocation0], 391
    %571 = vst.msk [vmem:[%s570] ss:$8 sm:$0xf] %vm569, %v568
    %s572 = scalar_lea.vmem [#allocation0], 391
    %573 = vst.msk [vmem:[%s572] ss:$8 sm:$0xf0] %vm569, %v568
    %s574 = scalar_lea.vmem %s0, 52
    %v575 = vld.sshfl [vmem:[%s574] sm:$0xff pattern:$0xb3a29180]
    %576 = vrot.lane.b32.xlu0 %v575, 16
    %v577 = vpop.permute.xlu0 %576
    %vm578 = vcmask 130048
    %s579 = scalar_lea.vmem [#allocation0], 455
    %580 = vst.msk [vmem:[%s579] ss:$8 sm:$0xf] %vm578, %v577
    %s581 = scalar_lea.vmem [#allocation0], 455
    %582 = vst.msk [vmem:[%s581] ss:$8 sm:$0xf0] %vm578, %v577
    %s584 = ssub.s32 8192, 8192
    %585 = vsyncadd [#allocation1], %s584
    %s587 = sshll.u32 [#allocation0], 4
    %s588 = int_to_ptr.vmem [resolvable:$true] %s587
    %590 = dma.vmem_to_hbm [thread:$0]  %s588, 8192, %s1, [#allocation1]
    %591 = dma.done [#allocation1], 8192
    %592 = vsyncpa [#allocation1], 1

// kernel: symmetric_out_model.1
$region0: #{symmetric_out_model.1}
  #allocation0 [shape = 'u32[]', space=smem, size = 0x4, offset = 0x4, fixed_abs, tag = 'smem constant byte address 0x4 - core index']
  #allocation1 [shape = 'u32[144,128]{1,0:T(1,128)}', space=vmem, size = 0x12000, scoped, tag = 'internal scratch']
  #allocation2 [shape = 'f32[8,290]{1,0:T(8,128)}', space=vmem, size = 0x3000, scoped, tag = 'scratch operand']
  %s0 = inlined_call_operand.vmem [shape: f32[2,8,256], index: 0, kind: input, shape index: {}]
  %s1 = inlined_call_operand.vmem [shape: f32[16,72], index: 1, kind: input, shape index: {}]
  %s2 = inlined_call_operand.vmem [shape: f32[16,1], index: 2, kind: input, shape index: {}]
  %s3 = inlined_call_operand.vmem [shape: f32[2,2,16,256], index: 3, kind: output, shape index: {}]
  %s4 = sld [smem:[#allocation0]]
  $region53: #{symmetric_out_model.1} parent=0
    _
  %s6 = ssub.s32 1, %s4
  %s7 = scalar_select 0, %s6, %s4
  loop: start=0, step=1, limit=6
  $region2: #{symmetric_out_model.1} parent=0 // loop_pre_header
    _
  $region3: #{symmetric_out_model.1} parent=0 // loop_header
    %s9 = sphi 0, %s13
    %p10 = scmp.ge.s32.totalorder %s9, 6
    %s16 = sphi 0, %s28
    %s17 = sphi 0, %s24
    %s18 = sphi 0, %s16
    %s19 = sphi 0, %s17
    %s20 = sphi 0, %s18
    %s21 = sphi 0, %s19
    %s31 = sphi 0, %s33
    %s34 = sphi 0, %s31
    %s35 = sphi 0, %s34
    %s51 = sphi 0, %s35
    %s55 = sphi 0, %s55
    %s57 = sphi 0, %s55
    %s58 = sphi 0, %s57
    %s72 = sphi 0, %s58
    %s76 = sphi 0, %s76
    %s78 = sphi 0, %s76
    %s79 = sphi 0, %s78
    %s93 = sphi 0, %s79
    %s101 = sphi 0, %s103
    %s104 = sphi 0, %s101
    %s105 = sphi 0, %s104
    %s121 = sphi 0, %s105
  $region4: #{symmetric_out_model.1} parent=0 // loop_header_branch
    %12 = sbr.rel (%p10) target = $region8
  $region5: #{symmetric_out_model.1} parent=0 // loop_body
    %s14 = ssub.s32 %s9, 1
    %s15 = ssub.s32 %s9, 2
    %s22 = sadd.s32 1, %s17
    %p23 = scmp.ge.s32.totalorder %s22, 2
    %s24 = scalar_select %p23, 0, %s22
    %s25 = sadd.s32 1, %s16
    %s26 = scalar_select %p23, %s25, %s16
    %p27 = scmp.ge.s32.totalorder %s26, 2
    %s28 = scalar_select %p27, 0, %s26
    %s29 = ssub.s32 %s16, %s28
    %p30 = scmp.eq.s32.totalorder %s29, 0
    %s32 = sadd.s32 %s31, 1
    %s33 = scalar_select %p30, %s31, %s32
    %p36 = pneg %p30
    %p37 = scmp.eq.s32.totalorder %s9, 3
    %p38 = por %p36, %p37
    %p39 = scmp.ne.s32.totalorder %s31, %s34
    %p40 = scmp.eq.s32.totalorder %s9, 0
    %p41 = por %p39, %p40
    %p42 = scmp.ne.s32.totalorder %s31, %s34
    %p43 = scmp.eq.s32.totalorder %s14, 3
    %p44 = por %p42, %p43
    %p45 = scmp.ne.s32.totalorder %s34, %s35
    %p46 = scmp.eq.s32.totalorder %s14, 0
    %p47 = por %p45, %p46
    %p48 = scmp.ne.s32.totalorder %s34, %s35
    %p49 = scmp.eq.s32.totalorder %s15, 3
    %p50 = por %p48, %p49
    %p52 = scmp.ne.s32.totalorder %s35, %s51
    %p53 = scmp.eq.s32.totalorder %s15, 0
    %p54 = por %p52, %p53
    %s56 = sadd.s32 %s55, 1
    %p59 = scmp.eq.s32.totalorder %s9, 3
    %p60 = scmp.ne.s32.totalorder %s55, %s57
    %p61 = scmp.eq.s32.totalorder %s9, 0
    %p62 = por %p60, %p61
    %p63 = scmp.ne.s32.totalorder %s55, %s57
    %p64 = scmp.eq.s32.totalorder %s14, 3
    %p65 = por %p63, %p64
    %p66 = scmp.ne.s32.totalorder %s57, %s58
    %p67 = scmp.eq.s32.totalorder %s14, 0
    %p68 = por %p66, %p67
    %p69 = scmp.ne.s32.totalorder %s57, %s58
    %p70 = scmp.eq.s32.totalorder %s15, 3
    %p71 = por %p69, %p70
    %p73 = scmp.ne.s32.totalorder %s58, %s72
    %p74 = scmp.eq.s32.totalorder %s15, 0
    %p75 = por %p73, %p74
    %s77 = sadd.s32 %s76, 1
    %p80 = scmp.eq.s32.totalorder %s9, 3
    %p81 = scmp.ne.s32.totalorder %s76, %s78
    %p82 = scmp.eq.s32.totalorder %s9, 0
    %p83 = por %p81, %p82
    %p84 = scmp.ne.s32.totalorder %s76, %s78
    %p85 = scmp.eq.s32.totalorder %s14, 3
    %p86 = por %p84, %p85
    %p87 = scmp.ne.s32.totalorder %s78, %s79
    %p88 = scmp.eq.s32.totalorder %s14, 0
    %p89 = por %p87, %p88
    %p90 = scmp.ne.s32.totalorder %s78, %s79
    %p91 = scmp.eq.s32.totalorder %s15, 3
    %p92 = por %p90, %p91
    %p94 = scmp.ne.s32.totalorder %s79, %s93
    %p95 = scmp.eq.s32.totalorder %s15, 0
    %p96 = por %p94, %p95
    %s97 = ssub.s32 %s17, %s24
    %s98 = ssub.s32 %s16, %s28
    %s99 = sor.u32 %s97, %s98
    %p100 = scmp.eq.s32.totalorder %s99, 0
    %s102 = sadd.s32 %s101, 1
    %s103 = scalar_select %p100, %s101, %s102
    %p106 = pneg %p100
    %p107 = scmp.eq.s32.totalorder %s9, 3
    %p108 = por %p106, %p107
    %p109 = scmp.ne.s32.totalorder %s101, %s104
    %p110 = scmp.eq.s32.totalorder %s9, 0
    %p111 = por %p109, %p110
    %p112 = scmp.ne.s32.totalorder %s101, %s104
    %p113 = scmp.eq.s32.totalorder %s14, 3
    %p114 = por %p112, %p113
    %p115 = scmp.ne.s32.totalorder %s104, %s105
    %p116 = scmp.eq.s32.totalorder %s14, 0
    %p117 = por %p115, %p116
    %p118 = scmp.ne.s32.totalorder %s104, %s105
    %p119 = scmp.eq.s32.totalorder %s15, 3
    %p120 = por %p118, %p119
    %p122 = scmp.ne.s32.totalorder %s105, %s121
    %p123 = scmp.eq.s32.totalorder %s15, 0
    %p124 = por %p122, %p123
    %p125 = scmp.le.s32.totalorder 1, %s9
    %p126 = scmp.lt.s32.totalorder %s9, 5
    %p127 = pnand %p125, %p126
    %p128 = pneg %p127
    // Predicated region
    $region9: #{symmetric_out_model.1} parent=5 // pred_check
      _
    $region10: #{symmetric_out_model.1} parent=5 // pred_check_branch
      %130 = sbr.rel (%p127) target = $region12
    $region11: #{symmetric_out_model.1} parent=5 // pred_region
      %s131 = ssub.s32 %s9, 1
      // Predicated region
      $region13: #{symmetric_out_model.1} parent=11 // pred_check
        %p132 = pneg %p68
      $region14: #{symmetric_out_model.1} parent=11 // pred_check_branch
        %134 = sbr.rel (%p132) target = $region16
      $region15: #{symmetric_out_model.1} parent=11 // pred_region
        _
      $region16: #{symmetric_out_model.1} parent=11 // pred_fallthru
        _
      // Predicated region
      $region17: #{symmetric_out_model.1} parent=11 // pred_check
        %p135 = pneg %p89
      $region18: #{symmetric_out_model.1} parent=11 // pred_check_branch
        %137 = sbr.rel (%p135) target = $region20
      $region19: #{symmetric_out_model.1} parent=11 // pred_region
        _
      $region20: #{symmetric_out_model.1} parent=11 // pred_fallthru
        _
    $region12: #{symmetric_out_model.1} parent=5 // pred_fallthru
      _
    %p138 = scmp.lt.s32.totalorder %s9, 4
    // Predicated region
    $region21: #{symmetric_out_model.1} parent=5 // pred_check
      %p139 = pneg %p138
    $region22: #{symmetric_out_model.1} parent=5 // pred_check_branch
      %141 = sbr.rel (%p139) target = $region24
    $region23: #{symmetric_out_model.1} parent=5 // pred_region
      // Predicated region
      $region25: #{symmetric_out_model.1} parent=23 // pred_check
        %p142 = pneg %p41
      $region26: #{symmetric_out_model.1} parent=23 // pred_check_branch
        %144 = sbr.rel (%p142) target = $region28
      $region27: #{symmetric_out_model.1} parent=23 // pred_region
        %p145 = scmp.lt.s32.totalorder %s16, 1
        %s146 = scalar_select %p145, %s16, 1
        %s147 = smul.addr %s146, 2
        %s148 = smul.addr %s147, 8
        %s149 = scalar_lea.vmem %s0, %s148
      $region28: #{symmetric_out_model.1} parent=23 // pred_fallthru
        _
    $region24: #{symmetric_out_model.1} parent=5 // pred_fallthru
      _
    %p150 = scmp.le.s32.totalorder 1, %s9
    %p151 = scmp.lt.s32.totalorder %s9, 5
    %p152 = pnand %p150, %p151
    %p153 = pneg %p152
    // Predicated region
    $region29: #{symmetric_out_model.1} parent=5 // pred_check
      _
    $region30: #{symmetric_out_model.1} parent=5 // pred_check_branch
      %155 = sbr.rel (%p152) target = $region32
    $region31: #{symmetric_out_model.1} parent=5 // pred_region
      %s156 = ssub.s32 %s9, 1
      %p157 = scmp.lt.s32.totalorder %s18, 1
      %s158 = scalar_select %p157, %s18, 1
      %s159 = smul.addr %s158, 2
      %s160 = smul.addr %s159, 8
      %s161 = scalar_lea.vmem %s0, %s160
      %p162 = pneg %p47
      %p163 = pneg %p44
      %p164 = pneg %p68
      %p165 = pneg %p65
      %p166 = pneg %p89
      %p167 = pneg %p86
      %p168 = pneg %p117
      %p169 = pneg %p114
      %p170 = scmp.lt.s32.totalorder %s19, 1
      %s171 = scalar_select %p170, %s19, 1
      %p172 = scmp.lt.s32.totalorder %s18, 1
      %s173 = scalar_select %p172, %s18, 1
      %s174 = smul.addr %s173, 4
      %s175 = smul.addr %s171, 8
      %s176 = sadd.s32 %s174, %s175
      %s177 = smul.addr %s176, 8
      %s178 = scalar_lea.vmem %s3, %s177
      %p179 = scmp.lt.s32.totalorder %s18, 1
      %s180 = scalar_select %p179, %s18, 1
      %s181 = smul.addr %s180, 2
      %s182 = smul.addr %s181, 8
      %s183 = scalar_lea.vmem %s0, %s182
      %p184 = scmp.lt.s32.totalorder %s19, 1
      %s185 = scalar_select %p184, %s19, 1
      %p186 = scmp.lt.s32.totalorder %s18, 1
      %s187 = scalar_select %p186, %s18, 1
      %s188 = smul.addr %s187, 4
      %s189 = smul.addr %s185, 8
      %s190 = sadd.s32 %s188, %s189
      %s191 = smul.addr %s190, 8
      %s192 = scalar_lea.vmem %s3, %s191
      %v193 = vld [vmem:[%s183] sm:$0xff]
      %v194 = vld [vmem:[%s183 + $0x8] sm:$0xff]
      %vm195 = vcmask 138240
      %196 = vst.msk [vmem:[#allocation2] sm:$0xff] %vm195, 0.0
      %vm197 = vcmask 277640
      %198 = vst.msk [vmem:[#allocation2 + $0x10] sm:$0xff] %vm197, 0.0
      %p199 = scmp.eq.s32.totalorder %s19, 0
      // Predicated region
      $region33: #{symmetric_out_model.1} parent=31 // pred_check
        %p200 = pneg %p199
      $region34: #{symmetric_out_model.1} parent=31 // pred_check_branch
        %202 = sbr.rel (%p200) target = $region36
      $region35: #{symmetric_out_model.1} parent=31 // pred_region
        %205 = vrot.lane.b32.xlu0 %v193, 17
        %v206 = vpop.permute.xlu0 %205
        %207 = vrot.lane.b32.xlu0 %v194, 17
        %v208 = vpop.permute.xlu0 %207
        %v209 = vsel %vm195, %v206, %v208
        %vm213 = vcmask 1047688
        %214 = vst.msk [vmem:[#allocation2] sm:$0xff] %vm213, %v206
        %215 = vst [vmem:[#allocation2 + $0x8] sm:$0xff] %v209
        %216 = vst.msk [vmem:[#allocation2 + $0x10] sm:$0xff] %vm195, %v208
      $region36: #{symmetric_out_model.1} parent=31 // pred_fallthru
        _
      %p217 = scmp.ne.s32.totalorder %s19, 0
      // Predicated region
      $region37: #{symmetric_out_model.1} parent=31 // pred_check
        %p218 = pneg %p217
      $region38: #{symmetric_out_model.1} parent=31 // pred_check_branch
        %220 = sbr.rel (%p218) target = $region40
      $region39: #{symmetric_out_model.1} parent=31 // pred_region
        %222 = vrot.lane.b32.xlu0 %v194, 16
        %v223 = vpop.permute.xlu0 %222
        %225 = vrot.lane.b32.xlu0 %v194, 48
        %v226 = vpop.permute.xlu0 %225
        %228 = vrot.lane.b32.xlu0 %v194, 80
        %v229 = vpop.permute.xlu0 %228
        %231 = vrot.lane.b32.xlu0 %v194, 112
        %v232 = vpop.permute.xlu0 %231
        %235 = vrot.lane.b32.xlu0 %v193, 16
        %v236 = vpop.permute.xlu0 %235
        %238 = vrot.lane.b32.xlu0 %v193, 48
        %v239 = vpop.permute.xlu0 %238
        %241 = vrot.lane.b32.xlu0 %v193, 80
        %v242 = vpop.permute.xlu0 %241
        %244 = vrot.lane.b32.xlu0 %v193, 112
        %v245 = vpop.permute.xlu0 %244
        %vm247 = vcmask 130048
        %v248 = vsel %vm247, %v223, %v226
        %vm249 = vcmask 261120
        %v250 = vsel %vm249, %v248, %v229
        %vm251 = vcmask 392192
        %v252 = vsel %vm251, %v250, %v232
        %vm253 = vcmask 523264
        %v254 = vsel %vm253, %v252, %v223
        %vm255 = vcmask 654336
        %v256 = vsel %vm255, %v254, %v226
        %vm257 = vcmask 785408
        %v258 = vsel %vm257, %v256, %v229
        %vm259 = vcmask 916480
        %v260 = vsel %vm259, %v258, %v232
        %v261 = vsel %vm247, %v236, %v239
        %v262 = vsel %vm249, %v261, %v242
        %v263 = vsel %vm251, %v262, %v245
        %v264 = vsel %vm253, %v263, %v236
        %v265 = vsel %vm255, %v264, %v239
        %v266 = vsel %vm257, %v265, %v242
        %v267 = vsel %vm259, %v266, %v245
        %270 = vrot.lane.b32.xlu0 %v260, 17
        %v271 = vpop.permute.xlu0 %270
        %272 = vrot.lane.b32.xlu0 %v267, 17
        %v273 = vpop.permute.xlu0 %272
        %v274 = vsel %vm195, %v271, %v273
        %vm278 = vcmask 1047688
        %279 = vst.msk [vmem:[#allocation2] sm:$0xff] %vm278, %v271
        %280 = vst [vmem:[#allocation2 + $0x8] sm:$0xff] %v274
        %281 = vst.msk [vmem:[#allocation2 + $0x10] sm:$0xff] %vm195, %v273
      $region40: #{symmetric_out_model.1} parent=31 // pred_fallthru
        _
      %v282 = vlaneseq
      %v283 = vand.u32 %v282, 127
      %vm284 = vcmp.gt.s32.totalorder %v283, 0
      %v285 = vsel %vm284, 1, 0
      %v286 = vcvt.s32.f32 %v285
      %288 = vrot.lane.b32.xlu0 %v286, 16
      %v289 = vpop.permute.xlu0 %288
      %291 = vrot.lane.b32.xlu0 %v286, 32
      %v292 = vpop.permute.xlu0 %291
      %294 = vrot.lane.b32.xlu0 %v286, 48
      %v295 = vpop.permute.xlu0 %294
      %297 = vrot.lane.b32.xlu0 %v286, 64
      %v298 = vpop.permute.xlu0 %297
      %300 = vrot.lane.b32.xlu0 %v286, 80
      %v301 = vpop.permute.xlu0 %300
      %303 = vrot.lane.b32.xlu0 %v286, 96
      %v304 = vpop.permute.xlu0 %303
      %306 = vrot.lane.b32.xlu0 %v286, 112
      %v307 = vpop.permute.xlu0 %306
      %vm309 = vcmask 130048
      %v310 = vsel %vm309, %v286, %v289
      %vm311 = vcmask 261120
      %v312 = vsel %vm311, %v310, %v292
      %vm313 = vcmask 392192
      %v314 = vsel %vm313, %v312, %v295
      %vm315 = vcmask 523264
      %v316 = vsel %vm315, %v314, %v298
      %vm317 = vcmask 654336
      %v318 = vsel %vm317, %v316, %v301
      %vm319 = vcmask 785408
      %v320 = vsel %vm319, %v318, %v304
      %vm321 = vcmask 916480
      %v322 = vsel %vm321, %v320, %v307
      %vm323 = vcmp.lt.s32.totalorder %v283, 15
      %v324 = vsel %vm323, 1, 0
      %v325 = vcvt.s32.f32 %v324
      %327 = vrot.lane.b32.xlu0 %v325, 16
      %v328 = vpop.permute.xlu0 %327
      %330 = vrot.lane.b32.xlu0 %v325, 32
      %v331 = vpop.permute.xlu0 %330
      %333 = vrot.lane.b32.xlu0 %v325, 48
      %v334 = vpop.permute.xlu0 %333
      %336 = vrot.lane.b32.xlu0 %v325, 64
      %v337 = vpop.permute.xlu0 %336
      %339 = vrot.lane.b32.xlu0 %v325, 80
      %v340 = vpop.permute.xlu0 %339
      %342 = vrot.lane.b32.xlu0 %v325, 96
      %v343 = vpop.permute.xlu0 %342
      %345 = vrot.lane.b32.xlu0 %v325, 112
      %v346 = vpop.permute.xlu0 %345
      %v348 = vsel %vm309, %v325, %v328
      %v349 = vsel %vm311, %v348, %v331
      %v350 = vsel %vm313, %v349, %v334
      %v351 = vsel %vm315, %v350, %v337
      %v352 = vsel %vm317, %v351, %v340
      %v353 = vsel %vm319, %v352, %v343
      %v354 = vsel %vm321, %v353, %v346
      %v355 = vld [vmem:[#allocation2] sm:$0xff]
      %v356 = vld [vmem:[#allocation2 + $0x8] sm:$0xff]
      %v357 = vld [vmem:[#allocation2 + $0x10] sm:$0xff]
      %v358 = vlaneseq
      %v359 = vshrl.u32 %v358, 7
      %v360 = vsub.s32 0, %v359
      %v361 = vrot.slane %v322, %v360
      %v362 = vmul.f32 %v355, %v361
      %v363 = vmul.f32 %v356, %v361
      %v364 = vlaneseq
      %v365 = vshrl.u32 %v364, 7
      %v366 = vsub.s32 0, %v365
      %v367 = vrot.slane %v354, %v366
      %369 = vrot.lane.b32.xlu0 %v367, 2
      %v370 = vpop.permute.xlu0 %369
      %v372 = vmul.f32 %v355, %v370
      %v373 = vmul.f32 %v356, %v370
      %v374 = vmul.f32 %v357, %v370
      %376 = vrot.lane.b32.xlu0 %v361, 16
      %v377 = vpop.permute.xlu0 %376
      %v379 = vmul.f32 %v355, %v377
      %v380 = vmul.f32 %v356, %v377
      %v381 = vmul.f32 %v357, %v377
      %382 = vrot.lane.b32.xlu0 %v367, 18
      %v383 = vpop.permute.xlu0 %382
      %v385 = vmul.f32 %v355, %v383
      %v386 = vmul.f32 %v356, %v383
      %v387 = vmul.f32 %v357, %v383
      %388 = vrot.lane.b32.xlu0 %v361, 32
      %v389 = vpop.permute.xlu0 %388
      %v391 = vmul.f32 %v355, %v389
      %v392 = vmul.f32 %v356, %v389
      %v393 = vmul.f32 %v357, %v389
      %394 = vrot.lane.b32.xlu0 %v367, 34
      %v395 = vpop.permute.xlu0 %394
      %v397 = vmul.f32 %v355, %v395
      %v398 = vmul.f32 %v356, %v395
      %v399 = vmul.f32 %v357, %v395
      %403 = vrot.lane.b32.xlu0 %v355, 127
      %v404 = vpop.permute.xlu0 %403
      %405 = vrot.lane.b32.xlu0 %v356, 127
      %v406 = vpop.permute.xlu0 %405
      %407 = vrot.lane.b32.xlu0 %v357, 127
      %v408 = vpop.permute.xlu0 %407
      %vm409 = vcmask 1039360
      %v410 = vsel %vm409, %v404, %v406
      %v411 = vsel %vm409, %v406, %v408
      %417 = vrot.lane.b32.xlu0 %v372, 126
      %v418 = vpop.permute.xlu0 %417
      %419 = vrot.lane.b32.xlu0 %v373, 126
      %v420 = vpop.permute.xlu0 %419
      %421 = vrot.lane.b32.xlu0 %v374, 126
      %v422 = vpop.permute.xlu0 %421
      %vm423 = vcmask 1031168
      %v424 = vsel %vm423, %v418, %v420
      %v425 = vsel %vm423, %v420, %v422
      %431 = vrot.lane.b32.xlu0 %v379, 112
      %v432 = vpop.permute.xlu0 %431
      %433 = vrot.lane.b32.xlu0 %v380, 112
      %v434 = vpop.permute.xlu0 %433
      %435 = vrot.lane.b32.xlu0 %v381, 112
      %v436 = vpop.permute.xlu0 %435
      %v437 = vsel %vm321, %v432, %v434
      %v438 = vsel %vm321, %v434, %v436
      %441 = vrot.lane.b32.xlu0 %v355, 111
      %v442 = vpop.permute.xlu0 %441
      %443 = vrot.lane.b32.xlu0 %v356, 111
      %v444 = vpop.permute.xlu0 %443
      %445 = vrot.lane.b32.xlu0 %v357, 111
      %v446 = vpop.permute.xlu0 %445
      %vm447 = vcmask 908288
      %v448 = vsel %vm447, %v442, %v444
      %v449 = vsel %vm447, %v444, %v446
      %455 = vrot.lane.b32.xlu0 %v385, 110
      %v456 = vpop.permute.xlu0 %455
      %457 = vrot.lane.b32.xlu0 %v386, 110
      %v458 = vpop.permute.xlu0 %457
      %459 = vrot.lane.b32.xlu0 %v387, 110
      %v460 = vpop.permute.xlu0 %459
      %vm461 = vcmask 900096
      %v462 = vsel %vm461, %v456, %v458
      %v463 = vsel %vm461, %v458, %v460
      %469 = vrot.lane.b32.xlu0 %v391, 96
      %v470 = vpop.permute.xlu0 %469
      %471 = vrot.lane.b32.xlu0 %v392, 96
      %v472 = vpop.permute.xlu0 %471
      %473 = vrot.lane.b32.xlu0 %v393, 96
      %v474 = vpop.permute.xlu0 %473
      %v475 = vsel %vm319, %v470, %v472
      %v476 = vsel %vm319, %v472, %v474
      %479 = vrot.lane.b32.xlu0 %v355, 95
      %v480 = vpop.permute.xlu0 %479
      %481 = vrot.lane.b32.xlu0 %v356, 95
      %v482 = vpop.permute.xlu0 %481
      %483 = vrot.lane.b32.xlu0 %v357, 95
      %v484 = vpop.permute.xlu0 %483
      %vm485 = vcmask 777216
      %v486 = vsel %vm485, %v480, %v482
      %v487 = vsel %vm485, %v482, %v484
      %493 = vrot.lane.b32.xlu0 %v397, 94
      %v494 = vpop.permute.xlu0 %493
      %495 = vrot.lane.b32.xlu0 %v398, 94
      %v496 = vpop.permute.xlu0 %495
      %497 = vrot.lane.b32.xlu0 %v399, 94
      %v498 = vpop.permute.xlu0 %497
      %vm499 = vcmask 769024
      %v500 = vsel %vm499, %v494, %v496
      %v501 = vsel %vm499, %v496, %v498
      %v504 = vld [vmem:[%s1] sm:$0xff]
      %v505 = vld [vmem:[%s1 + $0x8] sm:$0xff]
      %v506 = vld [vmem:[%s2] sm:$0xff]
      %v507 = vld [vmem:[%s2 + $0x8] sm:$0xff]
      %509 = vset.pattern.permute.xlu0 0
      %510 = vperm.xlu0 %509, %v506
      %v511 = vpop.permute.xlu0 %510
      %514 = vset.pattern.permute.xlu0 0
      %515 = vperm.xlu0 %514, %v507
      %v516 = vpop.permute.xlu0 %515
      %vm518 = vcmask 588800
      %v520 = vsel %vm518, %v504, 0
      %v523 = vsel %vm518, %v505, 0
      %525 = vmatprep.subr.mxu0 %v363
      %526 = vmatpush1.msra.mxu0 %v362
      %527 = vmatprep.subr.mxu0 %v411
      %528 = vmatpush1.msra.mxu0 %v410
      %529 = vmatprep.subr.mxu0 %v425
      %530 = vmatpush1.msra.mxu0 %v424
      %531 = vmatprep.subr.mxu0 %v438
      %532 = vmatpush1.msra.mxu0 %v437
      %533 = vmatprep.subr.mxu0 %v449
      %534 = vmatpush1.msra.mxu0 %v448
      %535 = vmatprep.subr.mxu0 %v463
      %536 = vmatpush1.msra.mxu0 %v462
      %537 = vmatprep.subr.mxu0 %v476
      %538 = vmatpush1.msra.mxu0 %v475
      %539 = vmatprep.subr.mxu0 %v487
      %540 = vmatpush1.msra.mxu0 %v486
      %541 = vmatprep.subr.mxu0 %v501
      %542 = vmatpush1.msra.mxu0 %v500
      %543 = vmatprep.subr.mxu0 0.0
      %544 = vmatpush1.msra.mxu0 0.0
      %545 = vmatprep.subr.mxu0 0.0
      %546 = vmatpush1.msra.mxu0 0.0
      %547 = vmatprep.subr.mxu0 0.0
      %548 = vmatpush1.msra.mxu0 0.0
      %549 = vmatprep.subr.mxu0 0.0
      %550 = vmatpush1.msra.mxu0 0.0
      %551 = vmatprep.subr.mxu0 0.0
      %552 = vmatpush1.msra.mxu0 0.0
      %553 = vmatprep.subr.mxu0 0.0
      %554 = vmatpush1.msra.mxu0 0.0
      %555 = vmatprep.subr.mxu0 0.0
      %556 = vmatpush1.msra.mxu0 0.0
      %557 = vmatprep.subr.mxu0 0.0
      %558 = vmatpush1.msra.mxu0 0.0
      %559 = vmatprep.subr.mxu0 0.0
      %560 = vmatpush1.msra.mxu0 0.0
      %561 = vmatprep.subr.mxu0 0.0
      %562 = vmatpush1.msra.mxu0 0.0
      %563 = vmatprep.subr.mxu0 0.0
      %564 = vmatpush1.msra.mxu0 0.0
      %565 = vmatprep.subr.mxu0 0.0
      %566 = vmatpush1.msra.mxu0 0.0
      %567 = vmatprep.subr.mxu0 0.0
      %568 = vmatpush1.msra.mxu0 0.0
      %569 = vmatprep.subr.mxu0 0.0
      %570 = vmatpush1.msra.mxu0 0.0
      %571 = vmatprep.subr.mxu0 0.0
      %572 = vmatpush1.msra.mxu0 0.0
      %573 = vmatprep.subr.mxu0 0.0
      %574 = vmatpush1.msra.mxu0 0.0
      %575 = vmatprep.subr.mxu0 0.0
      %576 = vmatpush1.msra.mxu0 0.0
      %577 = vmatprep.subr.mxu0 0.0
      %578 = vmatpush1.msra.mxu0 0.0
      %579 = vmatprep.subr.mxu0 0.0
      %580 = vmatpush1.msra.mxu0 0.0
      %581 = vmatprep.subr.mxu0 0.0
      %582 = vmatpush1.msra.mxu0 0.0
      %583 = vmatprep.subr.mxu0 0.0
      %584 = vmatpush1.msra.mxu0 0.0
      %585 = vmatprep.subr.mxu0 0.0
      %586 = vmatpush1.msra.mxu0 0.0
      %587 = vmatprep.subr.mxu0 0.0
      %588 = vmatpush1.msra.mxu0 0.0
      %589 = vmatprep.mubr.f32.mxu0 0.0
      %590 = vmatmul.mubr.f32.gmra.mrb[0].mxu0 %v520
      %v591 = vpop.f32.mrb[0].mxu0
      %v592 = vadd.f32 %v511, %v591
      %v593 = vpop.f32.mrb[0].mxu0
      %v594 = vadd.f32 %v511, %v593
      %595 = vmatprep.mubr.f32.mxu0 0.0
      %596 = vmatmul.mubr.f32.gmra.mrb[0].mxu0 %v523
      %v597 = vpop.f32.mrb[0].mxu0
      %v598 = vadd.f32 %v516, %v597
      %v599 = vpop.f32.mrb[0].mxu0
      %v600 = vadd.f32 %v516, %v599
      %601 = vdwg.mxu0
      %v602 = vmax.f32 %v592, 0.0
      %v603 = vmax.f32 %v594, 0.0
      %v604 = vmax.f32 %v598, 0.0
      %v605 = vmax.f32 %v600, 0.0
      %606 = vst [vmem:[%s192] sm:$0xff] %v602
      %607 = vst [vmem:[%s192 + $0x8] sm:$0xff] %v603
      %608 = vst [vmem:[%s192 + $0x10] sm:$0xff] %v604
      %609 = vst [vmem:[%s192 + $0x18] sm:$0xff] %v605
      %p610 = scmp.lt.s32.totalorder %s19, 1
      %s611 = scalar_select %p610, %s19, 1
      %p612 = scmp.lt.s32.totalorder %s18, 1
      %s613 = scalar_select %p612, %s18, 1
      %s614 = smul.addr %s613, 4
      %s615 = smul.addr %s611, 8
      %s616 = sadd.s32 %s614, %s615
      %s617 = smul.addr %s616, 8
      %s618 = scalar_lea.vmem %s3, %s617
      // Predicated region
      $region41: #{symmetric_out_model.1} parent=31 // pred_check
        %p619 = pneg %p114
      $region42: #{symmetric_out_model.1} parent=31 // pred_check_branch
        %621 = sbr.rel (%p619) target = $region44
      $region43: #{symmetric_out_model.1} parent=31 // pred_region
        _
      $region44: #{symmetric_out_model.1} parent=31 // pred_fallthru
        _
    $region32: #{symmetric_out_model.1} parent=5 // pred_fallthru
      _
    %p622 = scmp.le.s32.totalorder 2, %s9
    // Predicated region
    $region45: #{symmetric_out_model.1} parent=5 // pred_check
      %p623 = pneg %p622
    $region46: #{symmetric_out_model.1} parent=5 // pred_check_branch
      %625 = sbr.rel (%p623) target = $region48
    $region47: #{symmetric_out_model.1} parent=5 // pred_region
      %s626 = ssub.s32 %s9, 2
      // Predicated region
      $region49: #{symmetric_out_model.1} parent=47 // pred_check
        %p627 = pneg %p120
      $region50: #{symmetric_out_model.1} parent=47 // pred_check_branch
        %629 = sbr.rel (%p627) target = $region52
      $region51: #{symmetric_out_model.1} parent=47 // pred_region
        %p630 = scmp.lt.s32.totalorder %s21, 1
        %s631 = scalar_select %p630, %s21, 1
        %p632 = scmp.lt.s32.totalorder %s20, 1
        %s633 = scalar_select %p632, %s20, 1
        %s634 = smul.addr %s633, 4
        %s635 = smul.addr %s631, 8
        %s636 = sadd.s32 %s634, %s635
        %s637 = smul.addr %s636, 8
        %s638 = scalar_lea.vmem %s3, %s637
      $region52: #{symmetric_out_model.1} parent=47 // pred_fallthru
        _
    $region48: #{symmetric_out_model.1} parent=5 // pred_fallthru
      _
  $region6: #{symmetric_out_model.1} parent=0 // loop_footer
    %s13 = sadd.s32 1, %s9
  $region7: #{symmetric_out_model.1} parent=0 // loop_footer_branch
    %8 = sbr.rel target = $region3
  $region8: #{symmetric_out_model.1} parent=0 // loop_exit
    _

</llo_original>
